<compile_context>
chip_gen: v6e
topology: v6e:2x2x1
jax: 0.10.0
libtpu: 0.0.40
codegen_flags: <defaults>
</compile_context>

<pallas_src>
import functools

import jax
import jax.numpy as jnp
from jax.experimental import pallas as pl
from jax.experimental.pallas import tpu as pltpu


def _round_up(x, m):
    return ((x + m - 1) // m) * m


def _vmem_budget():
    """Return (vmem_limit_bytes, per-step working-set budget).

    Physical VMEM per TensorCore: 128 MiB (v5e/v6e), 64 MiB (v7x).  We raise
    the scoped limit explicitly (the 16/32 MiB defaults are what actually cap
    block sizes) and size the per-step working set off it:
      v5e/v6e -> limit 96 MiB, budget 16 MiB;  v7x -> limit 48 MiB, budget 12 MiB.
    """
    try:
        phys = int(pltpu.get_tpu_info().vmem_capacity_bytes)
    except Exception:  # interpret mode / unknown chip -> conservative (v7x)
        phys = 64 * 1024 * 1024
    vmem_limit = min((phys * 3) // 4, 100 * 1024 * 1024)
    budget = min(16 * 1024 * 1024, vmem_limit // 4)
    return vmem_limit, budget


def _divisor_chunk(c, max_tc):
    """Largest multiple-of-128 divisor of c that is <= max_tc (or None)."""
    d = (max_tc // 128) * 128
    while d >= 128:
        if c % d == 0:
            return d
        d -= 128
    return None


def _xent_kernel(logits_ref, target_ref, out_ref, m_sc, l_sc, p_sc, *,
                 n_rows, n_classes, tm, tc, class_padded):
    """One (row-tile, class-chunk) grid step of streaming cross-entropy.

    Online logsumexp over class chunks with running (max, sum) f32 scratch;
    the per-row target logit is picked with a broadcast iota==target
    compare/select in the native dtype.  Emits one lane-dense f32 partial sum
    per row tile at the last chunk.
    """
    i = pl.program_id(0)
    j = pl.program_id(1)

    @pl.when(j == 0)
    def _():
        m_sc[...] = jnp.full_like(m_sc, -jnp.inf)
        l_sc[...] = jnp.zeros_like(l_sc)
        p_sc[...] = jnp.zeros_like(p_sc)

    logits = logits_ref[...]                                  # (tm, tc) native dtype
    tgt = target_ref[...]                                     # (tm, 1) int32

    # (1, tc) class ids for this chunk; broadcasting does the row expansion.
    cls = jax.lax.broadcasted_iota(jnp.int32, (1, tc), 1) + j * tc

    if class_padded:
        # padded class columns are zeros from jnp.pad -> mask to -inf so they
        # contribute nothing to max / exp.
        logits = jnp.where(cls < n_classes, logits,
                           jnp.asarray(-jnp.inf, dtype=logits.dtype))

    # ---- online logsumexp (running state in f32 scratch) -------------------
    m_prev = m_sc[...]
    m_cur = jnp.max(logits, axis=-1, keepdims=True).astype(jnp.float32)
    m_new = jnp.maximum(m_prev, m_cur)
    alpha = jnp.exp(m_prev - m_new)
    # only the exp chain runs in f32 -- no long-lived (tm, tc) f32 copy.
    p = jnp.exp(logits.astype(jnp.float32) - m_new)
    l_sc[...] = alpha * l_sc[...] + jnp.sum(p, axis=-1, keepdims=True)
    m_sc[...] = m_new

    # ---- picked logit: one-hot compare/select in the native dtype ----------
    onehot = cls == tgt                                       # (tm, tc) via broadcast
    picked = jnp.sum(jnp.where(onehot, logits, jnp.zeros((), dtype=logits.dtype)),
                     axis=-1, keepdims=True).astype(jnp.float32)
    p_sc[...] += picked

    @pl.when(j == pl.num_programs(1) - 1)
    def _():
        lse = m_sc[...] + jnp.log(l_sc[...])
        per_row = lse - p_sc[...]                             # (tm, 1)
        row = jax.lax.broadcasted_iota(jnp.int32, (tm, 1), 0) + i * tm
        per_row = jnp.where(row < n_rows, per_row, 0.0)       # mask padded rows
        # lane-dense, unmasked store of the per-tile partial sum
        out_ref[...] = jnp.full(out_ref.shape, jnp.sum(per_row), dtype=jnp.float32)


def softmax_cross_entropy_loss(logits, target, *, block_rows=None, class_chunk=None):
    """logits: (N, C) float (f32/bf16); target: (N,) integer class ids.

    Scalar f32 mean cross-entropy (torch CrossEntropyLoss, reduction='mean',
    no ignore_index / weights).
    """
    n, c = logits.shape
    target = target.astype(jnp.int32).reshape(n, 1)          # torch .long() -> int32
    itemsize = jnp.dtype(logits.dtype).itemsize

    vmem_limit, budget = _vmem_budget()

    # fixed per-row VMEM overhead: (tm, 1) int32 targets lane-pad to 128 and
    # are double-buffered, plus three (tm, 1) f32 scratch columns (m/l/picked).
    row_overhead = 2 * 128 * 4 + 3 * 128 * 4

    def per_row_bytes(tc_):
        # double-buffered native-dtype logits + ~one chunk-width of f32 transients
        return 2 * tc_ * itemsize + 4 * tc_ + row_overhead

    # ---- class-axis chunking -------------------------------------------------
    if class_chunk is not None:
        tc = min(int(class_chunk), c)
        if tc < c:
            tc = max(128, (tc // 128) * 128)
    elif budget // per_row_bytes(c) >= 64:
        tc = c                        # whole class axis per block (full-dim, no 128 pad)
    else:
        # vocab-scale C: chunk the class axis (online logsumexp in the kernel)
        rows_target = 256
        max_tc = max(128, ((budget // rows_target - row_overhead)
                           // (2 * itemsize + 4)) // 128 * 128)
        tc = _divisor_chunk(c, max_tc) or min(max_tc, _round_up(c, 128))

    if tc >= c:
        tc, c_pad = c, c
    else:
        c_pad = _round_up(c, tc)
    num_col_tiles = c_pad // tc
    class_padded = c_pad != c

    # ---- row tiling ------------------------------------------------------------
    if block_rows is None:
        tm = max(8, min(8192, (budget // per_row_bytes(tc) // 8) * 8))
    else:
        tm = max(8, (int(block_rows) // 8) * 8)
    n_pad8 = _round_up(n, 8)
    tm = min(tm, n_pad8)
    if block_rows is None and n_pad8 >= 32:
        # keep >= 4 row tiles so the "parallel" batch axis can shard across
        # TensorCores (v7x has 2 TCs per chip).
        tm = min(tm, max(8, _round_up(pl.cdiv(n, 4), 8)))

    num_row_tiles = pl.cdiv(n, tm)
    n_pad = num_row_tiles * tm

    # TODO(synk): for very large N/C the jnp.pad below copies the logits once
    #             in HBM; a tail-masked final block would avoid that.
    if n_pad != n or c_pad != c:
        logits = jnp.pad(logits, ((0, n_pad - n), (0, c_pad - c)))
    if n_pad != n:
        target = jnp.pad(target, ((0, n_pad - n), (0, 0)))

    kernel = functools.partial(_xent_kernel, n_rows=n, n_classes=c, tm=tm, tc=tc,
                               class_padded=class_padded)

    partials = pl.pallas_call(
        kernel,
        out_shape=jax.ShapeDtypeStruct((num_row_tiles, 8, 128), jnp.float32),
        grid=(num_row_tiles, num_col_tiles),
        in_specs=[
            # logits stream in their native dtype (bf16 stays bf16 on the DMA)
            pl.BlockSpec((tm, tc), lambda i, j: (i, j)),
            # targets: same block across the class axis (no re-DMA per chunk)
            pl.BlockSpec((tm, 1), lambda i, j: (i, 0)),
        ],
        out_specs=pl.BlockSpec((1, 8, 128), lambda i, j: (i, 0, 0)),
        scratch_shapes=[
            pltpu.VMEM((tm, 1), jnp.float32),   # running max
            pltpu.VMEM((tm, 1), jnp.float32),   # running sum(exp)
            pltpu.VMEM((tm, 1), jnp.float32),   # picked target logit
        ],
        compiler_params=pltpu.CompilerParams(
            dimension_semantics=("parallel", "arbitrary"),
            vmem_limit_bytes=int(vmem_limit),
        ),
        cost_estimate=pl.CostEstimate(
            flops=6 * n * c,
            transcendentals=n * c,
            bytes_accessed=n * c * itemsize + n * 4 + num_row_tiles * 8 * 128 * 4,
        ),
    )(logits, target)

    # tiny final reduction outside the kernel; multiply by precomputed 1/N.
    return jnp.sum(partials[:, 0, 0]) * jnp.float32(1.0 / n)


if __name__ == "__main__":
    key = jax.random.PRNGKey(0)
    k1, k2, k3, k4, k5, k6 = jax.random.split(key, 6)

    # case 1: small f32, single row tile, single class chunk
    N, C = 8, 32
    logits = jax.random.normal(k1, (N, C), dtype=jnp.float32)
    target = jax.random.randint(k2, (N,), 0, C, dtype=jnp.int32)
    loss = softmax_cross_entropy_loss(logits, target)
    jax.block_until_ready(loss)
    ref = jnp.mean(jax.nn.logsumexp(logits, axis=-1) - logits[jnp.arange(N), target])
    assert jnp.allclose(loss, ref, atol=1e-5, rtol=1e-5), (loss, ref)

    # case 2: bf16 logits, ragged batch (row padding, native-dtype streaming,
    # multiple row tiles on the parallel axis)
    N2, C2 = 50, 200
    logits2 = jax.random.normal(k3, (N2, C2), dtype=jnp.bfloat16)
    target2 = jax.random.randint(k4, (N2,), 0, C2, dtype=jnp.int32)
    loss2 = softmax_cross_entropy_loss(logits2, target2)
    jax.block_until_ready(loss2)
    l2f = logits2.astype(jnp.float32)
    ref2 = jnp.mean(jax.nn.logsumexp(l2f, axis=-1) - l2f[jnp.arange(N2), target2])
    assert jnp.allclose(loss2, ref2, atol=1e-3, rtol=1e-3), (loss2, ref2)

    # case 3: force the chunked-class (online logsumexp) path incl. class padding
    N3, C3 = 24, 300
    logits3 = jax.random.normal(k5, (N3, C3), dtype=jnp.float32)
    target3 = jax.random.randint(k6, (N3,), 0, C3, dtype=jnp.int32)
    loss3 = softmax_cross_entropy_loss(logits3, target3, block_rows=16, class_chunk=128)
    jax.block_until_ready(loss3)
    ref3 = jnp.mean(jax.nn.logsumexp(logits3, axis=-1) - logits3[jnp.arange(N3), target3])
    assert jnp.allclose(loss3, ref3, atol=1e-5, rtol=1e-5), (loss3, ref3)

    print("KERNEL_OK")
</pallas_src>

<mosaic_0001>
module attributes {stable_mosaic.version = 11 : i64} {
  func.func @_xent_kernel(%arg0: i32, %arg1: i32, %arg2: memref<8x32xf32, #tpu.memory_space<vmem>>, %arg3: memref<8x1xi32, #tpu.memory_space<vmem>>, %arg4: memref<1x8x128xf32, #tpu.memory_space<vmem>>, %arg5: memref<8x1xf32, #tpu.memory_space<vmem>>, %arg6: memref<8x1xf32, #tpu.memory_space<vmem>>, %arg7: memref<8x1xf32, #tpu.memory_space<vmem>>) attributes {dimension_semantics = [#tpu.dimension_semantics<parallel>, #tpu.dimension_semantics<arbitrary>], iteration_bounds = array<i64: 1, 1>, scalar_prefetch = 0 : i64, scratch_operands = 3 : i64, tpu.core_type = #tpu.core_type<tc>, window_params = [{transform_indices = @transform_0, window_bounds = array<i64: 8, 32>}, {transform_indices = @transform_1, window_bounds = array<i64: 8, 1>}, {transform_indices = @transform_2, window_bounds = array<i64: 1, 8, 128>}]} {
    %c0_i32 = arith.constant 0 : i32
    %0 = arith.cmpi eq, %arg1, %c0_i32 : i32
    %1 = arith.extui %0 : i1 to i32
    %c0_i32_0 = arith.constant 0 : i32
    %2 = arith.cmpi ne, %1, %c0_i32_0 : i32
    scf.if %2 {
      %cst_21 = arith.constant 0xFF800000 : f32
      %38 = vector.broadcast %cst_21 : f32 to vector<8x1xf32>
      %c0_22 = arith.constant 0 : index
      %c0_23 = arith.constant 0 : index
      %39 = vector.load %arg5[%c0_22, %c0_23] : memref<8x1xf32, #tpu.memory_space<vmem>>, vector<8x1xf32>
      tpu.vector_store %arg5[%c0_22, %c0_23], %38 {strides = array<i32>} : memref<8x1xf32, #tpu.memory_space<vmem>>, vector<8x1xf32>,
      %cst_24 = arith.constant 0.000000e+00 : f32
      %40 = vector.broadcast %cst_24 : f32 to vector<8x1xf32>
      %c0_25 = arith.constant 0 : index
      %c0_26 = arith.constant 0 : index
      %41 = vector.load %arg6[%c0_25, %c0_26] : memref<8x1xf32, #tpu.memory_space<vmem>>, vector<8x1xf32>
      tpu.vector_store %arg6[%c0_25, %c0_26], %40 {strides = array<i32>} : memref<8x1xf32, #tpu.memory_space<vmem>>, vector<8x1xf32>,
      %cst_27 = arith.constant 0.000000e+00 : f32
      %42 = vector.broadcast %cst_27 : f32 to vector<8x1xf32>
      %c0_28 = arith.constant 0 : index
      %c0_29 = arith.constant 0 : index
      %43 = vector.load %arg7[%c0_28, %c0_29] : memref<8x1xf32, #tpu.memory_space<vmem>>, vector<8x1xf32>
      tpu.vector_store %arg7[%c0_28, %c0_29], %42 {strides = array<i32>} : memref<8x1xf32, #tpu.memory_space<vmem>>, vector<8x1xf32>,
    } else {
    }
    %c0 = arith.constant 0 : index
    %c0_1 = arith.constant 0 : index
    %3 = vector.load %arg2[%c0, %c0_1] : memref<8x32xf32, #tpu.memory_space<vmem>>, vector<8x32xf32>
    %c0_2 = arith.constant 0 : index
    %c0_3 = arith.constant 0 : index
    %4 = vector.load %arg3[%c0_2, %c0_3] : memref<8x1xi32, #tpu.memory_space<vmem>>, vector<8x1xi32>
    %5 = tpu.iota {dimensions = array<i32: 1>} : vector<1x32xi32>
    %c32_i32 = arith.constant 32 : i32
    %6 = arith.muli %arg1, %c32_i32 : i32
    %7 = vector.broadcast %6 : i32 to vector<1x32xi32>
    %8 = arith.addi %5, %7 : vector<1x32xi32>
    %c0_4 = arith.constant 0 : index
    %c0_5 = arith.constant 0 : index
    %9 = vector.load %arg5[%c0_4, %c0_5] : memref<8x1xf32, #tpu.memory_space<vmem>>, vector<8x1xf32>
    %cst = arith.constant dense<0xFF800000> : vector<8xf32>
    %10 = vector.multi_reduction <maximumf>, %3, %cst [1] : vector<8x32xf32> to vector<8xf32>
    %11 = vector.shape_cast %10 : vector<8xf32> to vector<8x1xf32>
    %12 = arith.maximumf %9, %11 : vector<8x1xf32>
    %13 = arith.subf %9, %12 : vector<8x1xf32>
    %14 = math.exp %13 : vector<8x1xf32>
    %15 = vector.broadcast %12 : vector<8x1xf32> to vector<8x32xf32>
    %16 = arith.subf %3, %15 : vector<8x32xf32>
    %17 = math.exp %16 : vector<8x32xf32>
    %c0_6 = arith.constant 0 : index
    %c0_7 = arith.constant 0 : index
    %18 = vector.load %arg6[%c0_6, %c0_7] : memref<8x1xf32, #tpu.memory_space<vmem>>, vector<8x1xf32>
    %19 = arith.mulf %14, %18 : vector<8x1xf32>
    %cst_8 = arith.constant dense<0.000000e+00> : vector<8xf32>
    %20 = vector.multi_reduction <add>, %17, %cst_8 [1] : vector<8x32xf32> to vector<8xf32>
    %21 = vector.shape_cast %20 : vector<8xf32> to vector<8x1xf32>
    %22 = arith.addf %19, %21 : vector<8x1xf32>
    %c0_9 = arith.constant 0 : index
    %c0_10 = arith.constant 0 : index
    %23 = vector.load %arg6[%c0_9, %c0_10] : memref<8x1xf32, #tpu.memory_space<vmem>>, vector<8x1xf32>
    tpu.vector_store %arg6[%c0_9, %c0_10], %22 {strides = array<i32>} : memref<8x1xf32, #tpu.memory_space<vmem>>, vector<8x1xf32>,
    %c0_11 = arith.constant 0 : index
    %c0_12 = arith.constant 0 : index
    %24 = vector.load %arg5[%c0_11, %c0_12] : memref<8x1xf32, #tpu.memory_space<vmem>>, vector<8x1xf32>
    tpu.vector_store %arg5[%c0_11, %c0_12], %12 {strides = array<i32>} : memref<8x1xf32, #tpu.memory_space<vmem>>, vector<8x1xf32>,
    %25 = vector.broadcast %8 : vector<1x32xi32> to vector<8x32xi32>
    %26 = vector.broadcast %4 : vector<8x1xi32> to vector<8x32xi32>
    %27 = arith.cmpi eq, %25, %26 : vector<8x32xi32>
    %cst_13 = arith.constant 0.000000e+00 : f32
    %28 = vector.broadcast %cst_13 : f32 to vector<8x32xf32>
    %29 = arith.select %27, %3, %28 : vector<8x32xi1>, vector<8x32xf32>
    %cst_14 = arith.constant dense<0.000000e+00> : vector<8xf32>
    %30 = vector.multi_reduction <add>, %29, %cst_14 [1] : vector<8x32xf32> to vector<8xf32>
    %31 = vector.shape_cast %30 : vector<8xf32> to vector<8x1xf32>
    %c0_15 = arith.constant 0 : index
    %c0_16 = arith.constant 0 : index
    %32 = vector.load %arg7[%c0_15, %c0_16] : memref<8x1xf32, #tpu.memory_space<vmem>>, vector<8x1xf32>
    %33 = arith.addf %32, %31 : vector<8x1xf32>
    %c0_17 = arith.constant 0 : index
    %c0_18 = arith.constant 0 : index
    %34 = vector.load %arg7[%c0_17, %c0_18] : memref<8x1xf32, #tpu.memory_space<vmem>>, vector<8x1xf32>
    tpu.vector_store %arg7[%c0_17, %c0_18], %33 {strides = array<i32>} : memref<8x1xf32, #tpu.memory_space<vmem>>, vector<8x1xf32>,
    %c0_i32_19 = arith.constant 0 : i32
    %35 = arith.cmpi eq, %arg1, %c0_i32_19 : i32
    %36 = arith.extui %35 : i1 to i32
    %c0_i32_20 = arith.constant 0 : i32
    %37 = arith.cmpi ne, %36, %c0_i32_20 : i32
    scf.if %37 {
      %c0_21 = arith.constant 0 : index
      %c0_22 = arith.constant 0 : index
      %38 = vector.load %arg5[%c0_21, %c0_22] : memref<8x1xf32, #tpu.memory_space<vmem>>, vector<8x1xf32>
      %c0_23 = arith.constant 0 : index
      %c0_24 = arith.constant 0 : index
      %39 = vector.load %arg6[%c0_23, %c0_24] : memref<8x1xf32, #tpu.memory_space<vmem>>, vector<8x1xf32>
      %40 = math.log %39 : vector<8x1xf32>
      %41 = arith.addf %38, %40 : vector<8x1xf32>
      %c0_25 = arith.constant 0 : index
      %c0_26 = arith.constant 0 : index
      %42 = vector.load %arg7[%c0_25, %c0_26] : memref<8x1xf32, #tpu.memory_space<vmem>>, vector<8x1xf32>
      %43 = arith.subf %41, %42 : vector<8x1xf32>
      %44 = tpu.iota {dimensions = array<i32: 0>} : vector<8x1xi32>
      %c8_i32 = arith.constant 8 : i32
      %45 = arith.muli %arg0, %c8_i32 : i32
      %46 = vector.broadcast %45 : i32 to vector<8x1xi32>
      %47 = arith.addi %44, %46 : vector<8x1xi32>
      %c8_i32_27 = arith.constant 8 : i32
      %48 = vector.broadcast %c8_i32_27 : i32 to vector<8x1xi32>
      %49 = arith.cmpi slt, %47, %48 : vector<8x1xi32>
      %cst_28 = arith.constant 0.000000e+00 : f32
      %50 = vector.broadcast %cst_28 : f32 to vector<8x1xf32>
      %51 = arith.select %49, %43, %50 : vector<8x1xi1>, vector<8x1xf32>
      %52 = vector.shape_cast %51 : vector<8x1xf32> to vector<1x8x1xf32>
      %cst_29 = arith.constant dense<0.000000e+00> : vector<1xf32>
      %53 = vector.multi_reduction <add>, %52, %cst_29 [1, 2] : vector<1x8x1xf32> to vector<1xf32>
      %54 = vector.shape_cast %53 : vector<1xf32> to vector<1x1x1xf32>
      %55 = vector.extract %54[0, 0, 0] : f32 from vector<1x1x1xf32>
      %56 = vector.broadcast %55 : f32 to vector<1x8x128xf32>
      %c0_30 = arith.constant 0 : index
      %c0_31 = arith.constant 0 : index
      %c0_32 = arith.constant 0 : index
      %57 = vector.load %arg4[%c0_30, %c0_31, %c0_32] : memref<1x8x128xf32, #tpu.memory_space<vmem>>, vector<1x8x128xf32>
      tpu.vector_store %arg4[%c0_30, %c0_31, %c0_32], %56 {strides = array<i32>} : memref<1x8x128xf32, #tpu.memory_space<vmem>>, vector<1x8x128xf32>,
    } else {
    }
    return
  }
  func.func @transform_0(%arg0: i32, %arg1: i32) -> (i32, i32) {
    %c0_i32 = arith.constant 0 : i32
    return %arg0, %arg1 : i32, i32
  }
  func.func @transform_1(%arg0: i32, %arg1: i32) -> (i32, i32) {
    %c0_i32 = arith.constant 0 : i32
    %c0_i32_0 = arith.constant 0 : i32
    return %arg0, %c0_i32 : i32, i32
  }
  func.func @transform_2(%arg0: i32, %arg1: i32) -> (i32, i32, i32) {
    %c0_i32 = arith.constant 0 : i32
    %c0_i32_0 = arith.constant 0 : i32
    %c0_i32_1 = arith.constant 0 : i32
    return %arg0, %c0_i32, %c0_i32_0 : i32, i32, i32
  }
}

</mosaic_0001>

<llo_original>
// kernel: tpu_custom_call.1
$region0: #{tpu_custom_call.1}
  #allocation0 [shape = 'u32[]', space=smem, size = 0x4, offset = 0x4, fixed_abs, tag = 'smem constant byte address 0x4 - core index']
  #allocation1 [shape = 'u32[144,128]{1,0:T(1,128)}', space=vmem, size = 0x12000, scoped, tag = 'internal scratch']
  #allocation2 [shape = 'f32[8,1]{1,0:T(8,128)}', space=vmem, size = 0x1000, scoped, tag = 'scratch operand']
  #allocation3 [shape = 'f32[8,1]{1,0:T(8,128)}', space=vmem, size = 0x1000, scoped, tag = 'scratch operand']
  #allocation4 [shape = 'f32[8,1]{1,0:T(8,128)}', space=vmem, size = 0x1000, scoped, tag = 'scratch operand']
  %s0 = inlined_call_operand.vmem [shape: f32[8,32], index: 0, kind: input, shape index: {}]
  %s1 = inlined_call_operand.vmem [shape: s32[8,1], index: 1, kind: input, shape index: {}]
  %s2 = inlined_call_operand.hbm [shape: f32[1,8,128], index: 2, kind: output, shape index: {}]
  %s3 = sld [smem:[#allocation0]]
  $region26: #{tpu_custom_call.1} parent=0
    _
  %s5 = ssub.s32 1, %s3
  %s6 = scalar_select 0, %s5, %s3
  $region1: #{tpu_custom_call.1} parent=0
    #allocation5 [shape = 'u8[4096]{0}', space=vmem, size = 0x1000, scoped, tag = 'output window, operand 0, single buffered']
    #allocation6 [shape = 's32[1]{0}', space=sflag, size = 0x4, scoped, tag = 'scoped memory for tpu_custom_call.1']
    %7 = vsyncpa [#allocation6], 0
    // Predicated region
    $region2: #{tpu_custom_call.1} parent=1 // pred_check
      _
    $region3: #{tpu_custom_call.1} parent=1 // pred_check_branch
      %9 = sbr.rel (0) target = $region5
    $region4: #{tpu_custom_call.1} parent=1 // pred_region
      _
    $region5: #{tpu_custom_call.1} parent=1 // pred_fallthru
      _
    // Predicated region
    $region6: #{tpu_custom_call.1} parent=1 // pred_check
      _
    $region7: #{tpu_custom_call.1} parent=1 // pred_check_branch
      %11 = sbr.rel (0) target = $region9
    $region8: #{tpu_custom_call.1} parent=1 // pred_region
      _
    $region9: #{tpu_custom_call.1} parent=1 // pred_fallthru
      _
    %p12 = scmp.eq.s32.totalorder 0, 0
    // Predicated region
    $region10: #{tpu_custom_call.1} parent=1 // pred_check
      %p13 = pneg %p12
    $region11: #{tpu_custom_call.1} parent=1 // pred_check_branch
      %15 = sbr.rel (%p13) target = $region13
    $region12: #{tpu_custom_call.1} parent=1 // pred_region
      %vm16 = vcmask 7168
      %17 = vst.msk [vmem:[#allocation2] sm:$0xff] %vm16, -inf
      %18 = vst.msk [vmem:[#allocation3] sm:$0xff] %vm16, 0.0
      %19 = vst.msk [vmem:[#allocation4] sm:$0xff] %vm16, 0.0
    $region13: #{tpu_custom_call.1} parent=1 // pred_fallthru
      _
    %v20 = vld [vmem:[%s0] sm:$0xff]
    %v21 = vld [vmem:[%s1] sm:$0xff]
    %v22 = vlaneseq
    %v23 = vand.u32 %v22, 127
    %s24 = smul.u32 0, 32
    %v25 = vstv %s24
    %v26 = vadd.s32 %v23, %v25
    %v27 = vld [vmem:[#allocation2] sm:$0xff]
    %vm28 = vcmask 261120
    %v29 = vsel %vm28, %v20, -inf
    %30 = vmax.xlane.f32.xlu0 %v29
    %v31 = vpop.xlane.xlu0 %30
    %v32 = vmax.f32 %v27, %v31
    %v33 = vsub.f32 %v27, %v32
    %v34 = vmul.f32 %v33, 1.442695
    %v35 = vpow.pop %v34
    %37 = vset.pattern.permute.xlu0 0
    %38 = vperm.xlu0 %37, %v32
    %v39 = vpop.permute.xlu0 %38
    %v41 = vsub.f32 %v20, %v39
    %v42 = vmul.f32 %v41, 1.442695
    %v43 = vpow.pop %v42
    %v44 = vld [vmem:[#allocation3] sm:$0xff]
    %v45 = vmul.f32 %v35, %v44
    %v46 = vsel %vm28, %v43, 0.0
    %47 = vadd.xlane.f32.xlu0 %v46
    %v48 = vpop.xlane.xlu0 %47
    %v49 = vadd.f32 %v45, %v48
    %vm50 = vcmask 7168
    %51 = vst.msk [vmem:[#allocation3] sm:$0xff] %vm50, %v49
    %52 = vst.msk [vmem:[#allocation2] sm:$0xff] %vm50, %v32
    %53 = vset.pattern.permute.xlu0 0
    %54 = vperm.xlu0 %53, %v21
    %v55 = vpop.permute.xlu0 %54
    %vm56 = vcmp.eq.s32.totalorder %v26, %v55
    %v57 = vsel %vm56, %v20, 0.0
    %v58 = vsel %vm28, %v57, 0.0
    %59 = vadd.xlane.f32.xlu0 %v58
    %v60 = vpop.xlane.xlu0 %59
    %v61 = vld [vmem:[#allocation4] sm:$0xff]
    %v62 = vadd.f32 %v61, %v60
    %63 = vst.msk [vmem:[#allocation4] sm:$0xff] %vm50, %v62
    // Predicated region
    $region14: #{tpu_custom_call.1} parent=1 // pred_check
      %p64 = pneg %p12
    $region15: #{tpu_custom_call.1} parent=1 // pred_check_branch
      %66 = sbr.rel (%p64) target = $region17
    $region16: #{tpu_custom_call.1} parent=1 // pred_region
      %v67 = vld [vmem:[#allocation2] sm:$0xff]
      %v68 = vld [vmem:[#allocation3] sm:$0xff]
      %v69 = vlog2.pop %v68
      %v70 = vmul.f32 %v69, 0.6931472
      %v71 = vadd.f32 %v67, %v70
      %v72 = vld [vmem:[#allocation4] sm:$0xff]
      %v73 = vsub.f32 %v71, %v72
      %v74 = vlaneseq
      %v75 = vshrl.u32 %v74, 7
      %s76 = smul.u32 0, 8
      %v77 = vstv %s76
      %v78 = vadd.s32 %v75, %v77
      %vm79 = vcmp.lt.s32.totalorder %v78, 8
      %v80 = vsel %vm79, %v73, 0.0
      %v81 = vsel %vm50, %v80, 0.0
      %82 = vadd.xlane.f32.xlu0 %v81
      %v83 = vpop.xlane.xlu0 %82
      %v84 = vrot.slane %v83, 4
      %v85 = vadd.f32 %v83, %v84
      %v86 = vrot.slane %v85, 2
      %v87 = vadd.f32 %v85, %v86
      %v88 = vrot.slane %v87, 1
      %v89 = vadd.f32 %v87, %v88
      %s90 = vtos %v89
      %v91 = vstv %s90
      %92 = vst [vmem:[#allocation5] sm:$0xff] %v91
    $region17: #{tpu_custom_call.1} parent=1 // pred_fallthru
      _
    // Predicated region
    $region18: #{tpu_custom_call.1} parent=1 // pred_check
      _
    $region19: #{tpu_custom_call.1} parent=1 // pred_check_branch
      %94 = sbr.rel (0) target = $region21
    $region20: #{tpu_custom_call.1} parent=1 // pred_region
      %s96 = ssub.s32 128, 128
      %97 = vsyncadd [#allocation6], %s96
      %s99 = sshll.u32 [#allocation5], 4
      %s100 = int_to_ptr.vmem [resolvable:$true] %s99
      %102 = dma.vmem_to_hbm [thread:$0]  %s100, 128, %s2, [#allocation6]
    $region21: #{tpu_custom_call.1} parent=1 // pred_fallthru
      _
    // Predicated region
    $region22: #{tpu_custom_call.1} parent=1 // pred_check
      _
    $region23: #{tpu_custom_call.1} parent=1 // pred_check_branch
      %104 = sbr.rel (0) target = $region25
    $region24: #{tpu_custom_call.1} parent=1 // pred_region
      %105 = dma.done [#allocation6], 128
    $region25: #{tpu_custom_call.1} parent=1 // pred_fallthru
      _
    %106 = vsyncpa [#allocation6], 1

</llo_original>
